<compile_context>
chip_gen: v5e
topology: v5e:2x2
jax: 0.10.0
libtpu: 0.0.40
codegen_flags: <defaults>
</compile_context>

<pallas_src>
import math
import jax
import jax.numpy as jnp
from jax.experimental import pallas as pl
from jax.experimental.pallas import tpu as pltpu

_HALF_LOG_2PI = 0.5 * math.log(2.0 * math.pi)


def _reinforce_policy_kernel(xT_ref, w_ref, b_ref, scale_ref, lpc_ref, epsT_ref,
                             actT_ref, lpT_ref):
    # Tiles are [feature, batch]: nA -> sublanes, batch -> lanes (lane-dense output).
    xT = xT_ref[...]          # (D, TB)   float32
    w = w_ref[...]            # (nA, D)   float32  (torch-style weight, used directly)
    b = b_ref[...]            # (nA, 1)
    scale = scale_ref[...]    # (nA, 1)   softplus(std), precomputed in wrapper
    lpc = lpc_ref[...]        # (nA, 1)   log(scale) + 0.5*log(2*pi), precomputed
    eps = epsT_ref[...]       # (nA, TB)

    # Linear + tanh: W (nA, D) @ x^T (D, TB) -> (nA, TB) on the MXU.
    mean = jnp.tanh(jnp.dot(w, xT, preferred_element_type=jnp.float32) + b)

    # Reparameterized sample (matches Normal(mean, scale).sample()).
    action = mean + scale * eps

    # log N(action | mean, scale): diff = scale*eps  =>  -(diff^2)/(2 scale^2) = -0.5*eps^2
    log_prob = -0.5 * (eps * eps) - lpc

    actT_ref[...] = action
    lpT_ref[...] = log_prob


def reinforce_policy_forward(x, w_out, b_out, std_param, eps, *, batch_tile=512):
    """x: (B, D); w_out: (nA, D) torch-style; b_out: (nA,); std_param: (1, nA); eps: (B, nA)."""
    x = jnp.asarray(x, jnp.float32)
    eps = jnp.asarray(eps, jnp.float32)
    w = jnp.asarray(w_out, jnp.float32)                       # (nA, D)
    b = jnp.asarray(b_out, jnp.float32).reshape(-1, 1)        # (nA, 1)
    std = jnp.asarray(std_param, jnp.float32).reshape(-1, 1)  # (nA, 1)

    B, D = x.shape
    nA = w.shape[0]

    # std-only math hoisted out of the kernel (pure function of the (1, nA) parameter).
    scale = jax.nn.softplus(std)                              # numerically stable softplus
    log_scale = jnp.log(scale)
    lp_const = log_scale + jnp.float32(_HALF_LOG_2PI)         # (nA, 1)
    entropy_row = (0.5 + _HALF_LOG_2PI) + log_scale           # (nA, 1)

    # Transposed [feature, batch] layout: batch maps to lanes -> lane-dense loads/stores.
    xT = x.T                                                  # (D, B)
    epsT = eps.T                                              # (nA, B)

    if B > batch_tile:
        TB = batch_tile                                       # multiple of 128
        Bp = pl.cdiv(B, TB) * TB
        if Bp != B:
            xT = jnp.pad(xT, ((0, 0), (0, Bp - B)))
            epsT = jnp.pad(epsT, ((0, 0), (0, Bp - B)))
    else:
        TB = B                                                # full-extent block (small batch)
        Bp = B
    grid_b = Bp // TB

    out_shapes = (
        jax.ShapeDtypeStruct((nA, Bp), jnp.float32),          # action^T
        jax.ShapeDtypeStruct((nA, Bp), jnp.float32),          # log_prob^T
    )

    actT, lpT = pl.pallas_call(
        _reinforce_policy_kernel,
        out_shape=out_shapes,
        grid_spec=pl.GridSpec(
            grid=(grid_b,),
            in_specs=[
                pl.BlockSpec((D, TB), lambda i: (0, i)),      # x^T tile
                pl.BlockSpec((nA, D), lambda i: (0, 0)),      # weight (replicated)
                pl.BlockSpec((nA, 1), lambda i: (0, 0)),      # bias
                pl.BlockSpec((nA, 1), lambda i: (0, 0)),      # scale
                pl.BlockSpec((nA, 1), lambda i: (0, 0)),      # log_prob constant
                pl.BlockSpec((nA, TB), lambda i: (0, i)),     # eps^T tile
            ],
            out_specs=[
                pl.BlockSpec((nA, TB), lambda i: (0, i)),
                pl.BlockSpec((nA, TB), lambda i: (0, i)),
            ],
        ),
        compiler_params=pltpu.CompilerParams(
            dimension_semantics=("parallel",),                # megacore sharding on v7x
        ),
    )(xT, w, b, scale, lp_const, epsT)

    action = actT[:, :B].T
    log_prob = lpT[:, :B].T
    entropy = jnp.broadcast_to(entropy_row.T, (B, nA))
    return action, log_prob, entropy


def _reference(x, w_out, b_out, std_param, eps):
    mean = jnp.tanh(x @ w_out.T + b_out)
    scale = jax.nn.softplus(std_param)
    action = mean + scale * eps
    log_prob = (-((action - mean) ** 2) / (2.0 * scale * scale)
                - jnp.log(scale) - _HALF_LOG_2PI)
    entropy = jnp.broadcast_to(0.5 + _HALF_LOG_2PI + jnp.log(scale), mean.shape)
    return action, log_prob, entropy


if __name__ == "__main__":
    # ReinforcePolicy.forward only uses output_layer: Linear(hidden_dims[-1], nA),
    # so the state fed to the kernel has last dim == hidden_dims[-1].
    hidden_last = 64
    nA = 4

    key = jax.random.PRNGKey(0)
    k_x, k_w, k_b, k_eps, k_x2, k_eps2 = jax.random.split(key, 6)

    lim = 1.0 / math.sqrt(hidden_last)   # PyTorch Linear default init range
    w_out = jax.random.uniform(k_w, (nA, hidden_last), jnp.float32, -lim, lim)
    b_out = jax.random.uniform(k_b, (nA,), jnp.float32, -lim, lim)
    std_param = jnp.zeros((1, nA), jnp.float32)   # nn.Parameter(torch.zeros(1, nA))

    # Case 1: tiny batch (full-extent block, grid of 1).
    B = 2
    x = jax.random.normal(k_x, (B, hidden_last), jnp.float32)
    eps = jax.random.normal(k_eps, (B, nA), jnp.float32)
    out = reinforce_policy_forward(x, w_out, b_out, std_param, eps)
    jax.block_until_ready(out)
    ref = _reference(x, w_out, b_out, std_param, eps)
    for got, want in zip(out, ref):
        assert jnp.allclose(got, want, atol=1e-5), "mismatch (small batch)"

    # Case 2: batch larger than the tile -> exercises the padded, pipelined grid path.
    B2 = 300
    x2 = jax.random.normal(k_x2, (B2, hidden_last), jnp.float32)
    eps2 = jax.random.normal(k_eps2, (B2, nA), jnp.float32)
    out2 = reinforce_policy_forward(x2, w_out, b_out, std_param, eps2, batch_tile=128)
    jax.block_until_ready(out2)
    ref2 = _reference(x2, w_out, b_out, std_param, eps2)
    for got, want in zip(out2, ref2):
        assert jnp.allclose(got, want, atol=1e-5), "mismatch (tiled batch)"

    print("KERNEL_OK")
</pallas_src>

<mosaic_0001>
module attributes {stable_mosaic.version = 11 : i64} {
  func.func @_reinforce_policy_kernel(%arg0: i32, %arg1: memref<64x2xf32, #tpu.memory_space<vmem>>, %arg2: memref<4x64xf32, #tpu.memory_space<vmem>>, %arg3: memref<4x1xf32, #tpu.memory_space<vmem>>, %arg4: memref<4x1xf32, #tpu.memory_space<vmem>>, %arg5: memref<4x1xf32, #tpu.memory_space<vmem>>, %arg6: memref<4x2xf32, #tpu.memory_space<vmem>>, %arg7: memref<4x2xf32, #tpu.memory_space<vmem>>, %arg8: memref<4x2xf32, #tpu.memory_space<vmem>>) attributes {dimension_semantics = [#tpu.dimension_semantics<parallel>], iteration_bounds = array<i64: 1>, scalar_prefetch = 0 : i64, scratch_operands = 0 : i64, tpu.core_type = #tpu.core_type<tc>, window_params = [{transform_indices = @transform_0, window_bounds = array<i64: 64, 2>}, {pipeline_mode = #tpu.pipeline_mode<synchronous>, transform_indices = @transform_1, window_bounds = array<i64: 4, 64>}, {pipeline_mode = #tpu.pipeline_mode<synchronous>, transform_indices = @transform_2, window_bounds = array<i64: 4, 1>}, {pipeline_mode = #tpu.pipeline_mode<synchronous>, transform_indices = @transform_3, window_bounds = array<i64: 4, 1>}, {pipeline_mode = #tpu.pipeline_mode<synchronous>, transform_indices = @transform_4, window_bounds = array<i64: 4, 1>}, {transform_indices = @transform_5, window_bounds = array<i64: 4, 2>}, {transform_indices = @transform_6, window_bounds = array<i64: 4, 2>}, {transform_indices = @transform_7, window_bounds = array<i64: 4, 2>}]} {
    %c0 = arith.constant 0 : index
    %c0_0 = arith.constant 0 : index
    %0 = vector.load %arg1[%c0, %c0_0] : memref<64x2xf32, #tpu.memory_space<vmem>>, vector<64x2xf32>
    %c0_1 = arith.constant 0 : index
    %c0_2 = arith.constant 0 : index
    %1 = vector.load %arg2[%c0_1, %c0_2] : memref<4x64xf32, #tpu.memory_space<vmem>>, vector<4x64xf32>
    %c0_3 = arith.constant 0 : index
    %c0_4 = arith.constant 0 : index
    %2 = vector.load %arg3[%c0_3, %c0_4] : memref<4x1xf32, #tpu.memory_space<vmem>>, vector<4x1xf32>
    %c0_5 = arith.constant 0 : index
    %c0_6 = arith.constant 0 : index
    %3 = vector.load %arg4[%c0_5, %c0_6] : memref<4x1xf32, #tpu.memory_space<vmem>>, vector<4x1xf32>
    %c0_7 = arith.constant 0 : index
    %c0_8 = arith.constant 0 : index
    %4 = vector.load %arg5[%c0_7, %c0_8] : memref<4x1xf32, #tpu.memory_space<vmem>>, vector<4x1xf32>
    %c0_9 = arith.constant 0 : index
    %c0_10 = arith.constant 0 : index
    %5 = vector.load %arg6[%c0_9, %c0_10] : memref<4x2xf32, #tpu.memory_space<vmem>>, vector<4x2xf32>
    %cst = arith.constant dense<0.000000e+00> : vector<4x2xf32>
    %6 = tpu.matmul %1, %0, %cst {dimension_numbers = #tpu.dot_dimension_numbers<[1], [0], [0], [1], [0, 0, 1, 1], [], []>} : vector<4x64xf32>, vector<64x2xf32>, vector<4x2xf32> -> vector<4x2xf32>
    %7 = vector.broadcast %2 : vector<4x1xf32> to vector<4x2xf32>
    %8 = arith.addf %6, %7 : vector<4x2xf32>
    %9 = math.tanh %8 : vector<4x2xf32>
    %10 = vector.broadcast %3 : vector<4x1xf32> to vector<4x2xf32>
    %11 = arith.mulf %10, %5 : vector<4x2xf32>
    %12 = arith.addf %9, %11 : vector<4x2xf32>
    %13 = arith.mulf %5, %5 : vector<4x2xf32>
    %cst_11 = arith.constant -5.000000e-01 : f32
    %14 = vector.broadcast %cst_11 : f32 to vector<4x2xf32>
    %15 = arith.mulf %14, %13 : vector<4x2xf32>
    %16 = vector.broadcast %4 : vector<4x1xf32> to vector<4x2xf32>
    %17 = arith.subf %15, %16 : vector<4x2xf32>
    %c0_12 = arith.constant 0 : index
    %c0_13 = arith.constant 0 : index
    %18 = vector.load %arg7[%c0_12, %c0_13] : memref<4x2xf32, #tpu.memory_space<vmem>>, vector<4x2xf32>
    tpu.vector_store %arg7[%c0_12, %c0_13], %12 {strides = array<i32>} : memref<4x2xf32, #tpu.memory_space<vmem>>, vector<4x2xf32>,
    %c0_14 = arith.constant 0 : index
    %c0_15 = arith.constant 0 : index
    %19 = vector.load %arg8[%c0_14, %c0_15] : memref<4x2xf32, #tpu.memory_space<vmem>>, vector<4x2xf32>
    tpu.vector_store %arg8[%c0_14, %c0_15], %17 {strides = array<i32>} : memref<4x2xf32, #tpu.memory_space<vmem>>, vector<4x2xf32>,
    return
  }
  func.func @transform_0(%arg0: i32) -> (i32, i32) {
    %c0_i32 = arith.constant 0 : i32
    %c0_i32_0 = arith.constant 0 : i32
    return %c0_i32, %arg0 : i32, i32
  }
  func.func @transform_1(%arg0: i32) -> (i32, i32) {
    %c0_i32 = arith.constant 0 : i32
    %c0_i32_0 = arith.constant 0 : i32
    %c0_i32_1 = arith.constant 0 : i32
    return %c0_i32, %c0_i32_0 : i32, i32
  }
  func.func @transform_2(%arg0: i32) -> (i32, i32) {
    %c0_i32 = arith.constant 0 : i32
    %c0_i32_0 = arith.constant 0 : i32
    %c0_i32_1 = arith.constant 0 : i32
    return %c0_i32, %c0_i32_0 : i32, i32
  }
  func.func @transform_3(%arg0: i32) -> (i32, i32) {
    %c0_i32 = arith.constant 0 : i32
    %c0_i32_0 = arith.constant 0 : i32
    %c0_i32_1 = arith.constant 0 : i32
    return %c0_i32, %c0_i32_0 : i32, i32
  }
  func.func @transform_4(%arg0: i32) -> (i32, i32) {
    %c0_i32 = arith.constant 0 : i32
    %c0_i32_0 = arith.constant 0 : i32
    %c0_i32_1 = arith.constant 0 : i32
    return %c0_i32, %c0_i32_0 : i32, i32
  }
  func.func @transform_5(%arg0: i32) -> (i32, i32) {
    %c0_i32 = arith.constant 0 : i32
    %c0_i32_0 = arith.constant 0 : i32
    return %c0_i32, %arg0 : i32, i32
  }
  func.func @transform_6(%arg0: i32) -> (i32, i32) {
    %c0_i32 = arith.constant 0 : i32
    %c0_i32_0 = arith.constant 0 : i32
    return %c0_i32, %arg0 : i32, i32
  }
  func.func @transform_7(%arg0: i32) -> (i32, i32) {
    %c0_i32 = arith.constant 0 : i32
    %c0_i32_0 = arith.constant 0 : i32
    return %c0_i32, %arg0 : i32, i32
  }
}

</mosaic_0001>

<llo_original>
// kernel: tpu_custom_call.1
$region0: #{tpu_custom_call.1}
  #allocation0 [shape = 'u32[]', space=smem, size = 0x4, offset = 0x4, fixed_abs, tag = 'smem constant byte address 0x4 - core index']
  #allocation1 [shape = 'u32[72,128]{1,0:T(1,128)}', space=vmem, size = 0x9000, scoped, tag = 'internal scratch']
  %s0 = inlined_call_operand.vmem [shape: f32[64,2], index: 0, kind: input, shape index: {}]
  %s1 = inlined_call_operand.vmem [shape: f32[4,64], index: 1, kind: input, shape index: {}]
  %s2 = inlined_call_operand.vmem [shape: f32[4,1], index: 2, kind: input, shape index: {}]
  %s3 = inlined_call_operand.vmem [shape: f32[4,1], index: 3, kind: input, shape index: {}]
  %s4 = inlined_call_operand.vmem [shape: f32[4,1], index: 4, kind: input, shape index: {}]
  %s5 = inlined_call_operand.vmem [shape: f32[4,2], index: 5, kind: input, shape index: {}]
  %s6 = inlined_call_operand.vmem [shape: f32[4,2], index: 6, kind: output, shape index: {0}]
  %s7 = inlined_call_operand.vmem [shape: f32[4,2], index: 7, kind: output, shape index: {1}]
  %8 = xla_tuple %s6, %s7
  %s9 = sld [smem:[#allocation0]]
  $region42: #{tpu_custom_call.1} parent=0
    _
  %s11 = ssub.s32 1, %s9
  %s12 = scalar_select 0, %s11, %s9
  // Predicated region
  $region2: #{tpu_custom_call.1} parent=0 // pred_check
    _
  $region3: #{tpu_custom_call.1} parent=0 // pred_check_branch
    %14 = sbr.rel (0) target = $region5
  $region4: #{tpu_custom_call.1} parent=0 // pred_region
    _
  $region5: #{tpu_custom_call.1} parent=0 // pred_fallthru
    _
  // Predicated region
  $region6: #{tpu_custom_call.1} parent=0 // pred_check
    _
  $region7: #{tpu_custom_call.1} parent=0 // pred_check_branch
    %16 = sbr.rel (0) target = $region9
  $region8: #{tpu_custom_call.1} parent=0 // pred_region
    _
  $region9: #{tpu_custom_call.1} parent=0 // pred_fallthru
    _
  // Predicated region
  $region10: #{tpu_custom_call.1} parent=0 // pred_check
    _
  $region11: #{tpu_custom_call.1} parent=0 // pred_check_branch
    %18 = sbr.rel (0) target = $region13
  $region12: #{tpu_custom_call.1} parent=0 // pred_region
    _
  $region13: #{tpu_custom_call.1} parent=0 // pred_fallthru
    _
  // Predicated region
  $region14: #{tpu_custom_call.1} parent=0 // pred_check
    _
  $region15: #{tpu_custom_call.1} parent=0 // pred_check_branch
    %20 = sbr.rel (0) target = $region17
  $region16: #{tpu_custom_call.1} parent=0 // pred_region
    _
  $region17: #{tpu_custom_call.1} parent=0 // pred_fallthru
    _
  // Predicated region
  $region18: #{tpu_custom_call.1} parent=0 // pred_check
    _
  $region19: #{tpu_custom_call.1} parent=0 // pred_check_branch
    %22 = sbr.rel (0) target = $region21
  $region20: #{tpu_custom_call.1} parent=0 // pred_region
    _
  $region21: #{tpu_custom_call.1} parent=0 // pred_fallthru
    _
  // Predicated region
  $region22: #{tpu_custom_call.1} parent=0 // pred_check
    _
  $region23: #{tpu_custom_call.1} parent=0 // pred_check_branch
    %24 = sbr.rel (0) target = $region25
  $region24: #{tpu_custom_call.1} parent=0 // pred_region
    _
  $region25: #{tpu_custom_call.1} parent=0 // pred_fallthru
    _
  %v25 = vld [vmem:[%s0] sm:$0xff]
  %v26 = vld [vmem:[%s0 + $0x8] sm:$0xff]
  %v27 = vld [vmem:[%s0 + $0x10] sm:$0xff]
  %v28 = vld [vmem:[%s0 + $0x18] sm:$0xff]
  %v29 = vld [vmem:[%s0 + $0x20] sm:$0xff]
  %v30 = vld [vmem:[%s0 + $0x28] sm:$0xff]
  %v31 = vld [vmem:[%s0 + $0x30] sm:$0xff]
  %v32 = vld [vmem:[%s0 + $0x38] sm:$0xff]
  %v33 = vld [vmem:[%s1] sm:$0xf]
  %v34 = vld [vmem:[%s2] sm:$0xf]
  %v35 = vld [vmem:[%s3] sm:$0xf]
  %v36 = vld [vmem:[%s4] sm:$0xf]
  %v37 = vld [vmem:[%s5] sm:$0xf]
  %39 = vset.pattern.permute.xlu0 0
  %40 = vperm.xlu0 %39, %v34
  %v41 = vpop.permute.xlu0 %40
  %vm43 = vcmask 523264
  %v45 = vsel %vm43, %v33, 0
  %47 = vmatpush.msra.mxu0 0.0
  %48 = vmatpush.msra.mxu0 0.0
  %49 = vmatpush.msra.mxu0 0.0
  %50 = vmatpush.msra.mxu0 0.0
  %51 = vmatpush.msra.mxu0 0.0
  %52 = vmatpush.msra.mxu0 0.0
  %53 = vmatpush.msra.mxu0 0.0
  %54 = vmatpush.msra.mxu0 0.0
  %55 = vmatpush.msra.mxu0 %v32
  %56 = vmatpush.msra.mxu0 %v31
  %57 = vmatpush.msra.mxu0 %v30
  %58 = vmatpush.msra.mxu0 %v29
  %59 = vmatpush.msra.mxu0 %v28
  %60 = vmatpush.msra.mxu0 %v27
  %61 = vmatpush.msra.mxu0 %v26
  %62 = vmatpush.msra.mxu0 %v25
  %63 = vmatmul.f32.gmra.mxu0 %v45
  %v64 = vpop.f32.mrf.mxu0
  %v65 = vadd.f32 %v41, %v64
  %66 = vdwg.mxu0
  %v67 = vtanh.pop %v65
  %69 = vset.pattern.permute.xlu0 0
  %70 = vperm.xlu0 %69, %v35
  %v71 = vpop.permute.xlu0 %70
  %v73 = vmul.f32 %v71, %v37
  %v74 = vadd.f32 %v67, %v73
  %v75 = vmul.f32 %v37, %v37
  %v76 = vmul.f32 %v75, -0.5
  %78 = vset.pattern.permute.xlu0 0
  %79 = vperm.xlu0 %78, %v36
  %v80 = vpop.permute.xlu0 %79
  %v82 = vsub.f32 %v76, %v80
  %vm83 = vcmask 11264
  %84 = vst.msk [vmem:[%s6] sm:$0xf] %vm83, %v74
  %85 = vst.msk [vmem:[%s7] sm:$0xf] %vm83, %v82
  // Predicated region
  $region26: #{tpu_custom_call.1} parent=0 // pred_check
    _
  $region27: #{tpu_custom_call.1} parent=0 // pred_check_branch
    %87 = sbr.rel (0) target = $region29
  $region28: #{tpu_custom_call.1} parent=0 // pred_region
    _
  $region29: #{tpu_custom_call.1} parent=0 // pred_fallthru
    _
  // Predicated region
  $region30: #{tpu_custom_call.1} parent=0 // pred_check
    _
  $region31: #{tpu_custom_call.1} parent=0 // pred_check_branch
    %89 = sbr.rel (0) target = $region33
  $region32: #{tpu_custom_call.1} parent=0 // pred_region
    _
  $region33: #{tpu_custom_call.1} parent=0 // pred_fallthru
    _
  // Predicated region
  $region34: #{tpu_custom_call.1} parent=0 // pred_check
    _
  $region35: #{tpu_custom_call.1} parent=0 // pred_check_branch
    %91 = sbr.rel (0) target = $region37
  $region36: #{tpu_custom_call.1} parent=0 // pred_region
    _
  $region37: #{tpu_custom_call.1} parent=0 // pred_fallthru
    _
  // Predicated region
  $region38: #{tpu_custom_call.1} parent=0 // pred_check
    _
  $region39: #{tpu_custom_call.1} parent=0 // pred_check_branch
    %93 = sbr.rel (0) target = $region41
  $region40: #{tpu_custom_call.1} parent=0 // pred_region
    _
  $region41: #{tpu_custom_call.1} parent=0 // pred_fallthru
    _

</llo_original>
